<compile_context>
chip_gen: v7x
topology: tpu7x:2x2x1
jax: 0.10.0
libtpu: 0.0.40
codegen_flags: <defaults>
</compile_context>

<pallas_src>
import jax
import jax.numpy as jnp
from jax.experimental import pallas as pl
from jax.experimental.pallas import tpu as pltpu


def _round_up(n, m):
    return ((n + m - 1) // m) * m


def _cdiv(a, b):
    return (a + b - 1) // b


def qnet_kernel(x_ref,
                w1_ref, b1_ref,
                w2_ref, b2_ref,
                w3_ref, b3_ref,
                w4_ref, b4_ref,
                out_ref):
    # x: (state_size, tile_b) -- batch on the 128-lane axis.  Compute in f32.
    x = x_ref[...].astype(jnp.float32)

    # y = W @ x + b  (transposed form of PyTorch's y = x @ W.T + b).
    h = jnp.dot(w1_ref[...], x, preferred_element_type=jnp.float32) + b1_ref[...]
    h = jnp.maximum(h, 0.0)

    h = jnp.dot(w2_ref[...], h, preferred_element_type=jnp.float32) + b2_ref[...]
    h = jnp.maximum(h, 0.0)

    h = jnp.dot(w3_ref[...], h, preferred_element_type=jnp.float32) + b3_ref[...]
    h = jnp.maximum(h, 0.0)

    q = jnp.dot(w4_ref[...], h, preferred_element_type=jnp.float32) + b4_ref[...]

    out_ref[...] = q.astype(out_ref.dtype)


def qnetwork_forward_fb(x_fb, params, *, block_batch=16384, io_dtype=None):
    """Q-network forward in feature-major layout (no wrapper transposes).

    x_fb:    (state_size, batch) -- batch on the trailing (lane) axis.
    params:  dict with w1..w4 of shape (out_features, in_features) and
             b1..b4 of shape (out_features, 1)  (PyTorch layout).
    Returns  (action_size, batch) float32 Q-values.

    block_batch: target batch rows per grid step (forced to a multiple of 128).
    io_dtype:    optionally cast the streamed x (e.g. bf16) to halve HBM
                 traffic; accumulation inside the kernel stays f32.
    """
    state_size, batch = x_fb.shape
    action_size = params["w4"].shape[0]

    if io_dtype is not None:
        x_fb = x_fb.astype(io_dtype)

    # --- Tiling policy ----------------------------------------------------
    # 1) pad batch only to the 128-lane tile (waste < 1 vreg width of lanes);
    # 2) split the padded batch into n near-equal 128-aligned tiles so no grid
    #    step ever sees a partial (masked) block;
    # 3) once >= 2 lane tiles of work exist, force >= 2 grid steps so the
    #    "parallel" batch axis can shard across v7x's two TensorCores.
    block_batch = max(128, _round_up(block_batch, 128))
    padded_128 = _round_up(batch, 128)
    n_tiles = _cdiv(padded_128, block_batch)
    if n_tiles == 1 and padded_128 >= 256:
        n_tiles = 2
    tile_b = _round_up(_cdiv(padded_128, n_tiles), 128)
    n_tiles = _cdiv(padded_128, tile_b)
    padded_batch = n_tiles * tile_b

    if padded_batch != batch:
        x_fb = jnp.pad(x_fb, ((0, 0), (0, padded_batch - batch)))

    weight_args = (params["w1"], params["b1"],
                   params["w2"], params["b2"],
                   params["w3"], params["b3"],
                   params["w4"], params["b4"])

    # x/q are tiled along the batch (lane) axis; weights/biases use constant
    # index_maps so they are DMA'd once and stay resident in VMEM.
    in_specs = [pl.BlockSpec((state_size, tile_b), lambda i: (0, i))]
    in_specs += [pl.BlockSpec(w.shape, lambda i: (0, 0)) for w in weight_args]
    out_spec = pl.BlockSpec((action_size, tile_b), lambda i: (0, i))

    q_fb = pl.pallas_call(
        qnet_kernel,
        out_shape=jax.ShapeDtypeStruct((action_size, padded_batch), jnp.float32),
        grid=(n_tiles,),
        in_specs=in_specs,
        out_specs=out_spec,
        compiler_params=pltpu.CompilerParams(
            # Batch axis is embarrassingly parallel -> shards across the two
            # TensorCores on v7x; harmless on single-TC v5e/v6e.
            dimension_semantics=("parallel",),
            # Portable cap: tiles use only a few MiB, safe on v7x's 64 MiB VMEM.
            vmem_limit_bytes=32 * 1024 * 1024,
        ),
    )(x_fb, *weight_args)

    if padded_batch != batch:
        q_fb = q_fb[:, :batch]
    return q_fb


def qnetwork_forward(x, params, *, block_batch=16384, io_dtype=None):
    """PyTorch-layout wrapper: x (batch, state_size) -> q (batch, action_size).

    Prefer qnetwork_forward_fb where the producer/consumer can keep the
    (feature, batch) layout: the two transposes here roughly triple HBM
    traffic on this memory-bound workload.
    """
    if io_dtype is not None:
        x = x.astype(io_dtype)   # cast BEFORE the transpose/pad: halves that pass too
    q_fb = qnetwork_forward_fb(x.T, params, block_batch=block_batch, io_dtype=None)
    return q_fb.T


def init_params(key, state_size, action_size, hidden_size=8):
    """PyTorch-Linear-style init: U(-1/sqrt(fan_in), 1/sqrt(fan_in)).

    Weights are (out_features, in_features) (PyTorch layout), biases (out, 1).
    """
    dims = [(hidden_size, state_size),
            (hidden_size, hidden_size),
            (hidden_size, hidden_size),
            (action_size, hidden_size)]
    params = {}
    for idx, (fan_out, fan_in) in enumerate(dims, start=1):
        key, kw, kb = jax.random.split(key, 3)
        bound = 1.0 / (fan_in ** 0.5)
        params[f"w{idx}"] = jax.random.uniform(
            kw, (fan_out, fan_in), jnp.float32, minval=-bound, maxval=bound)
        params[f"b{idx}"] = jax.random.uniform(
            kb, (fan_out, 1), jnp.float32, minval=-bound, maxval=bound)
    return params


def reference_forward(x, params):
    h = x
    for i in (1, 2, 3):
        h = jnp.maximum(h @ params[f"w{i}"].T + params[f"b{i}"].T, 0.0)
    return h @ params["w4"].T + params["b4"].T


if __name__ == "__main__":
    state_size = 4
    action_size = 3
    batch = 2

    key = jax.random.PRNGKey(0)
    key, kx = jax.random.split(key)
    x = jax.random.normal(kx, (batch, state_size), jnp.float32)
    params = init_params(key, state_size, action_size)

    # Small-batch path (single 128-lane tile, grid=(1,)), PyTorch layout.
    q = jax.block_until_ready(qnetwork_forward(x, params))
    q_ref = reference_forward(x, params)
    assert q.shape == (batch, action_size), q.shape
    assert jnp.allclose(q, q_ref, atol=1e-5, rtol=1e-5), (q, q_ref)

    # Multi-tile path (grid=(2,), tile_b=512) via the feature-major entry
    # point (no wrapper transposes).
    key, kx2 = jax.random.split(key)
    xb = jax.random.normal(kx2, (1000, state_size), jnp.float32)
    qb_fb = jax.block_until_ready(qnetwork_forward_fb(xb.T, params))
    qb_ref = reference_forward(xb, params)
    assert qb_fb.shape == (action_size, 1000), qb_fb.shape
    assert jnp.allclose(qb_fb.T, qb_ref, atol=1e-4, rtol=1e-4), "batched path mismatch"

    # bf16-streamed-x path (f32 accumulation in-kernel).
    qh = jax.block_until_ready(qnetwork_forward(xb, params, io_dtype=jnp.bfloat16))
    qh_ref = reference_forward(xb.astype(jnp.bfloat16).astype(jnp.float32), params)
    assert qh.shape == (1000, action_size)
    assert jnp.allclose(qh, qh_ref, atol=1e-3, rtol=1e-3), "bf16 io path mismatch"

    print("KERNEL_OK")
</pallas_src>

<mosaic_0001>
module attributes {stable_mosaic.version = 11 : i64} {
  func.func @qnet_kernel(%arg0: i32, %arg1: memref<4x128xf32, #tpu.memory_space<vmem>>, %arg2: memref<8x4xf32, #tpu.memory_space<vmem>>, %arg3: memref<8x1xf32, #tpu.memory_space<vmem>>, %arg4: memref<8x8xf32, #tpu.memory_space<vmem>>, %arg5: memref<8x1xf32, #tpu.memory_space<vmem>>, %arg6: memref<8x8xf32, #tpu.memory_space<vmem>>, %arg7: memref<8x1xf32, #tpu.memory_space<vmem>>, %arg8: memref<3x8xf32, #tpu.memory_space<vmem>>, %arg9: memref<3x1xf32, #tpu.memory_space<vmem>>, %arg10: memref<3x128xf32, #tpu.memory_space<vmem>>) attributes {dimension_semantics = [#tpu.dimension_semantics<parallel>], iteration_bounds = array<i64: 1>, scalar_prefetch = 0 : i64, scratch_operands = 0 : i64, tpu.core_type = #tpu.core_type<tc>, window_params = [{transform_indices = @transform_0, window_bounds = array<i64: 4, 128>}, {pipeline_mode = #tpu.pipeline_mode<synchronous>, transform_indices = @transform_1, window_bounds = array<i64: 8, 4>}, {pipeline_mode = #tpu.pipeline_mode<synchronous>, transform_indices = @transform_2, window_bounds = array<i64: 8, 1>}, {pipeline_mode = #tpu.pipeline_mode<synchronous>, transform_indices = @transform_3, window_bounds = array<i64: 8, 8>}, {pipeline_mode = #tpu.pipeline_mode<synchronous>, transform_indices = @transform_4, window_bounds = array<i64: 8, 1>}, {pipeline_mode = #tpu.pipeline_mode<synchronous>, transform_indices = @transform_5, window_bounds = array<i64: 8, 8>}, {pipeline_mode = #tpu.pipeline_mode<synchronous>, transform_indices = @transform_6, window_bounds = array<i64: 8, 1>}, {pipeline_mode = #tpu.pipeline_mode<synchronous>, transform_indices = @transform_7, window_bounds = array<i64: 3, 8>}, {pipeline_mode = #tpu.pipeline_mode<synchronous>, transform_indices = @transform_8, window_bounds = array<i64: 3, 1>}, {transform_indices = @transform_9, window_bounds = array<i64: 3, 128>}]} {
    %c0 = arith.constant 0 : index
    %c0_0 = arith.constant 0 : index
    %0 = vector.load %arg1[%c0, %c0_0] : memref<4x128xf32, #tpu.memory_space<vmem>>, vector<4x128xf32>
    %c0_1 = arith.constant 0 : index
    %c0_2 = arith.constant 0 : index
    %1 = vector.load %arg2[%c0_1, %c0_2] : memref<8x4xf32, #tpu.memory_space<vmem>>, vector<8x4xf32>
    %cst = arith.constant dense<0.000000e+00> : vector<8x128xf32>
    %2 = tpu.matmul %1, %0, %cst {dimension_numbers = #tpu.dot_dimension_numbers<[1], [0], [0], [1], [0, 0, 1, 1], [], []>} : vector<8x4xf32>, vector<4x128xf32>, vector<8x128xf32> -> vector<8x128xf32>
    %c0_3 = arith.constant 0 : index
    %c0_4 = arith.constant 0 : index
    %3 = vector.load %arg3[%c0_3, %c0_4] : memref<8x1xf32, #tpu.memory_space<vmem>>, vector<8x1xf32>
    %4 = vector.broadcast %3 : vector<8x1xf32> to vector<8x128xf32>
    %5 = arith.addf %2, %4 : vector<8x128xf32>
    %cst_5 = arith.constant 0.000000e+00 : f32
    %6 = vector.broadcast %cst_5 : f32 to vector<8x128xf32>
    %7 = arith.maximumf %5, %6 : vector<8x128xf32>
    %c0_6 = arith.constant 0 : index
    %c0_7 = arith.constant 0 : index
    %8 = vector.load %arg4[%c0_6, %c0_7] : memref<8x8xf32, #tpu.memory_space<vmem>>, vector<8x8xf32>
    %cst_8 = arith.constant dense<0.000000e+00> : vector<8x128xf32>
    %9 = tpu.matmul %8, %7, %cst_8 {dimension_numbers = #tpu.dot_dimension_numbers<[1], [0], [0], [1], [0, 0, 1, 1], [], []>} : vector<8x8xf32>, vector<8x128xf32>, vector<8x128xf32> -> vector<8x128xf32>
    %c0_9 = arith.constant 0 : index
    %c0_10 = arith.constant 0 : index
    %10 = vector.load %arg5[%c0_9, %c0_10] : memref<8x1xf32, #tpu.memory_space<vmem>>, vector<8x1xf32>
    %11 = vector.broadcast %10 : vector<8x1xf32> to vector<8x128xf32>
    %12 = arith.addf %9, %11 : vector<8x128xf32>
    %cst_11 = arith.constant 0.000000e+00 : f32
    %13 = vector.broadcast %cst_11 : f32 to vector<8x128xf32>
    %14 = arith.maximumf %12, %13 : vector<8x128xf32>
    %c0_12 = arith.constant 0 : index
    %c0_13 = arith.constant 0 : index
    %15 = vector.load %arg6[%c0_12, %c0_13] : memref<8x8xf32, #tpu.memory_space<vmem>>, vector<8x8xf32>
    %cst_14 = arith.constant dense<0.000000e+00> : vector<8x128xf32>
    %16 = tpu.matmul %15, %14, %cst_14 {dimension_numbers = #tpu.dot_dimension_numbers<[1], [0], [0], [1], [0, 0, 1, 1], [], []>} : vector<8x8xf32>, vector<8x128xf32>, vector<8x128xf32> -> vector<8x128xf32>
    %c0_15 = arith.constant 0 : index
    %c0_16 = arith.constant 0 : index
    %17 = vector.load %arg7[%c0_15, %c0_16] : memref<8x1xf32, #tpu.memory_space<vmem>>, vector<8x1xf32>
    %18 = vector.broadcast %17 : vector<8x1xf32> to vector<8x128xf32>
    %19 = arith.addf %16, %18 : vector<8x128xf32>
    %cst_17 = arith.constant 0.000000e+00 : f32
    %20 = vector.broadcast %cst_17 : f32 to vector<8x128xf32>
    %21 = arith.maximumf %19, %20 : vector<8x128xf32>
    %c0_18 = arith.constant 0 : index
    %c0_19 = arith.constant 0 : index
    %22 = vector.load %arg8[%c0_18, %c0_19] : memref<3x8xf32, #tpu.memory_space<vmem>>, vector<3x8xf32>
    %cst_20 = arith.constant dense<0.000000e+00> : vector<3x128xf32>
    %23 = tpu.matmul %22, %21, %cst_20 {dimension_numbers = #tpu.dot_dimension_numbers<[1], [0], [0], [1], [0, 0, 1, 1], [], []>} : vector<3x8xf32>, vector<8x128xf32>, vector<3x128xf32> -> vector<3x128xf32>
    %c0_21 = arith.constant 0 : index
    %c0_22 = arith.constant 0 : index
    %24 = vector.load %arg9[%c0_21, %c0_22] : memref<3x1xf32, #tpu.memory_space<vmem>>, vector<3x1xf32>
    %25 = vector.broadcast %24 : vector<3x1xf32> to vector<3x128xf32>
    %26 = arith.addf %23, %25 : vector<3x128xf32>
    %c0_23 = arith.constant 0 : index
    %c0_24 = arith.constant 0 : index
    %27 = vector.load %arg10[%c0_23, %c0_24] : memref<3x128xf32, #tpu.memory_space<vmem>>, vector<3x128xf32>
    tpu.vector_store %arg10[%c0_23, %c0_24], %26 {strides = array<i32>} : memref<3x128xf32, #tpu.memory_space<vmem>>, vector<3x128xf32>,
    return
  }
  func.func @transform_0(%arg0: i32) -> (i32, i32) {
    %c0_i32 = arith.constant 0 : i32
    %c0_i32_0 = arith.constant 0 : i32
    return %c0_i32, %arg0 : i32, i32
  }
  func.func @transform_1(%arg0: i32) -> (i32, i32) {
    %c0_i32 = arith.constant 0 : i32
    %c0_i32_0 = arith.constant 0 : i32
    %c0_i32_1 = arith.constant 0 : i32
    return %c0_i32, %c0_i32_0 : i32, i32
  }
  func.func @transform_2(%arg0: i32) -> (i32, i32) {
    %c0_i32 = arith.constant 0 : i32
    %c0_i32_0 = arith.constant 0 : i32
    %c0_i32_1 = arith.constant 0 : i32
    return %c0_i32, %c0_i32_0 : i32, i32
  }
  func.func @transform_3(%arg0: i32) -> (i32, i32) {
    %c0_i32 = arith.constant 0 : i32
    %c0_i32_0 = arith.constant 0 : i32
    %c0_i32_1 = arith.constant 0 : i32
    return %c0_i32, %c0_i32_0 : i32, i32
  }
  func.func @transform_4(%arg0: i32) -> (i32, i32) {
    %c0_i32 = arith.constant 0 : i32
    %c0_i32_0 = arith.constant 0 : i32
    %c0_i32_1 = arith.constant 0 : i32
    return %c0_i32, %c0_i32_0 : i32, i32
  }
  func.func @transform_5(%arg0: i32) -> (i32, i32) {
    %c0_i32 = arith.constant 0 : i32
    %c0_i32_0 = arith.constant 0 : i32
    %c0_i32_1 = arith.constant 0 : i32
    return %c0_i32, %c0_i32_0 : i32, i32
  }
  func.func @transform_6(%arg0: i32) -> (i32, i32) {
    %c0_i32 = arith.constant 0 : i32
    %c0_i32_0 = arith.constant 0 : i32
    %c0_i32_1 = arith.constant 0 : i32
    return %c0_i32, %c0_i32_0 : i32, i32
  }
  func.func @transform_7(%arg0: i32) -> (i32, i32) {
    %c0_i32 = arith.constant 0 : i32
    %c0_i32_0 = arith.constant 0 : i32
    %c0_i32_1 = arith.constant 0 : i32
    return %c0_i32, %c0_i32_0 : i32, i32
  }
  func.func @transform_8(%arg0: i32) -> (i32, i32) {
    %c0_i32 = arith.constant 0 : i32
    %c0_i32_0 = arith.constant 0 : i32
    %c0_i32_1 = arith.constant 0 : i32
    return %c0_i32, %c0_i32_0 : i32, i32
  }
  func.func @transform_9(%arg0: i32) -> (i32, i32) {
    %c0_i32 = arith.constant 0 : i32
    %c0_i32_0 = arith.constant 0 : i32
    return %c0_i32, %arg0 : i32, i32
  }
}

</mosaic_0001>

<llo_original>
// kernel: tpu_custom_call.1
$region0: #{tpu_custom_call.1}
  #allocation0 [shape = 'u32[]', space=smem, size = 0x4, offset = 0x4, fixed_abs, tag = 'smem constant byte address 0x4 - core index']
  #allocation1 [shape = 'u32[144,128]{1,0:T(1,128)}', space=vmem, size = 0x12000, scoped, tag = 'internal scratch']
  %s0 = inlined_call_operand.vmem [shape: f32[4,128], index: 0, kind: input, shape index: {}]
  %s1 = inlined_call_operand.vmem [shape: f32[8,4], index: 1, kind: input, shape index: {}]
  %s2 = inlined_call_operand.vmem [shape: f32[8,1], index: 2, kind: input, shape index: {}]
  %s3 = inlined_call_operand.vmem [shape: f32[8,8], index: 3, kind: input, shape index: {}]
  %s4 = inlined_call_operand.vmem [shape: f32[8,1], index: 4, kind: input, shape index: {}]
  %s5 = inlined_call_operand.vmem [shape: f32[8,8], index: 5, kind: input, shape index: {}]
  %s6 = inlined_call_operand.vmem [shape: f32[8,1], index: 6, kind: input, shape index: {}]
  %s7 = inlined_call_operand.vmem [shape: f32[3,8], index: 7, kind: input, shape index: {}]
  %s8 = inlined_call_operand.vmem [shape: f32[3,1], index: 8, kind: input, shape index: {}]
  %s9 = inlined_call_operand.hbm [shape: f32[3,128], index: 9, kind: output, shape index: {}]
  %s10 = sld [smem:[#allocation0]]
  $region46: #{tpu_custom_call.1} parent=0
    _
  %s12 = ssub.s32 1, %s10
  %s13 = scalar_select 0, %s12, %s10
  $region1: #{tpu_custom_call.1} parent=0
    #allocation2 [shape = 'u8[2048]{0}', space=vmem, size = 0x800, scoped, tag = 'output window, operand 0, single buffered']
    #allocation3 [shape = 's32[1]{0}', space=sflag, size = 0x4, scoped, tag = 'scoped memory for tpu_custom_call.1']
    %14 = vsyncpa [#allocation3], 0
    // Predicated region
    $region2: #{tpu_custom_call.1} parent=1 // pred_check
      _
    $region3: #{tpu_custom_call.1} parent=1 // pred_check_branch
      %16 = sbr.rel (0) target = $region5
    $region4: #{tpu_custom_call.1} parent=1 // pred_region
      _
    $region5: #{tpu_custom_call.1} parent=1 // pred_fallthru
      _
    // Predicated region
    $region6: #{tpu_custom_call.1} parent=1 // pred_check
      _
    $region7: #{tpu_custom_call.1} parent=1 // pred_check_branch
      %18 = sbr.rel (0) target = $region9
    $region8: #{tpu_custom_call.1} parent=1 // pred_region
      _
    $region9: #{tpu_custom_call.1} parent=1 // pred_fallthru
      _
    // Predicated region
    $region10: #{tpu_custom_call.1} parent=1 // pred_check
      _
    $region11: #{tpu_custom_call.1} parent=1 // pred_check_branch
      %20 = sbr.rel (0) target = $region13
    $region12: #{tpu_custom_call.1} parent=1 // pred_region
      _
    $region13: #{tpu_custom_call.1} parent=1 // pred_fallthru
      _
    // Predicated region
    $region14: #{tpu_custom_call.1} parent=1 // pred_check
      _
    $region15: #{tpu_custom_call.1} parent=1 // pred_check_branch
      %22 = sbr.rel (0) target = $region17
    $region16: #{tpu_custom_call.1} parent=1 // pred_region
      _
    $region17: #{tpu_custom_call.1} parent=1 // pred_fallthru
      _
    // Predicated region
    $region18: #{tpu_custom_call.1} parent=1 // pred_check
      _
    $region19: #{tpu_custom_call.1} parent=1 // pred_check_branch
      %24 = sbr.rel (0) target = $region21
    $region20: #{tpu_custom_call.1} parent=1 // pred_region
      _
    $region21: #{tpu_custom_call.1} parent=1 // pred_fallthru
      _
    // Predicated region
    $region22: #{tpu_custom_call.1} parent=1 // pred_check
      _
    $region23: #{tpu_custom_call.1} parent=1 // pred_check_branch
      %26 = sbr.rel (0) target = $region25
    $region24: #{tpu_custom_call.1} parent=1 // pred_region
      _
    $region25: #{tpu_custom_call.1} parent=1 // pred_fallthru
      _
    // Predicated region
    $region26: #{tpu_custom_call.1} parent=1 // pred_check
      _
    $region27: #{tpu_custom_call.1} parent=1 // pred_check_branch
      %28 = sbr.rel (0) target = $region29
    $region28: #{tpu_custom_call.1} parent=1 // pred_region
      _
    $region29: #{tpu_custom_call.1} parent=1 // pred_fallthru
      _
    // Predicated region
    $region30: #{tpu_custom_call.1} parent=1 // pred_check
      _
    $region31: #{tpu_custom_call.1} parent=1 // pred_check_branch
      %30 = sbr.rel (0) target = $region33
    $region32: #{tpu_custom_call.1} parent=1 // pred_region
      _
    $region33: #{tpu_custom_call.1} parent=1 // pred_fallthru
      _
    // Predicated region
    $region34: #{tpu_custom_call.1} parent=1 // pred_check
      _
    $region35: #{tpu_custom_call.1} parent=1 // pred_check_branch
      %32 = sbr.rel (0) target = $region37
    $region36: #{tpu_custom_call.1} parent=1 // pred_region
      _
    $region37: #{tpu_custom_call.1} parent=1 // pred_fallthru
      _
    %v33 = vld [vmem:[%s0] sm:$0xf]
    %v34 = vld [vmem:[%s1] sm:$0xff]
    %v35 = vld [vmem:[%s2] sm:$0xff]
    %37 = vset.pattern.permute.xlu0 0
    %38 = vperm.xlu0 %37, %v35
    %v39 = vpop.permute.xlu0 %38
    %vm41 = vcmask 31744
    %v43 = vsel %vm41, %v34, 0
    %vm45 = vcmask 1043456
    %v47 = vsel %vm45, %v33, 0
    %49 = vmatprep.subr.mxu0 0.0
    %50 = vmatpush1.msra.mxu0 %v47
    %51 = vmatprep.subr.mxu0 0.0
    %52 = vmatpush1.msra.mxu0 0.0
    %53 = vmatprep.subr.mxu0 0.0
    %54 = vmatpush1.msra.mxu0 0.0
    %55 = vmatprep.subr.mxu0 0.0
    %56 = vmatpush1.msra.mxu0 0.0
    %57 = vmatprep.subr.mxu0 0.0
    %58 = vmatpush1.msra.mxu0 0.0
    %59 = vmatprep.subr.mxu0 0.0
    %60 = vmatpush1.msra.mxu0 0.0
    %61 = vmatprep.subr.mxu0 0.0
    %62 = vmatpush1.msra.mxu0 0.0
    %63 = vmatprep.subr.mxu0 0.0
    %64 = vmatpush1.msra.mxu0 0.0
    %65 = vmatprep.subr.mxu0 0.0
    %66 = vmatpush1.msra.mxu0 0.0
    %67 = vmatprep.subr.mxu0 0.0
    %68 = vmatpush1.msra.mxu0 0.0
    %69 = vmatprep.subr.mxu0 0.0
    %70 = vmatpush1.msra.mxu0 0.0
    %71 = vmatprep.subr.mxu0 0.0
    %72 = vmatpush1.msra.mxu0 0.0
    %73 = vmatprep.subr.mxu0 0.0
    %74 = vmatpush1.msra.mxu0 0.0
    %75 = vmatprep.subr.mxu0 0.0
    %76 = vmatpush1.msra.mxu0 0.0
    %77 = vmatprep.subr.mxu0 0.0
    %78 = vmatpush1.msra.mxu0 0.0
    %79 = vmatprep.subr.mxu0 0.0
    %80 = vmatpush1.msra.mxu0 0.0
    %81 = vmatprep.subr.mxu0 0.0
    %82 = vmatpush1.msra.mxu0 0.0
    %83 = vmatprep.subr.mxu0 0.0
    %84 = vmatpush1.msra.mxu0 0.0
    %85 = vmatprep.subr.mxu0 0.0
    %86 = vmatpush1.msra.mxu0 0.0
    %87 = vmatprep.subr.mxu0 0.0
    %88 = vmatpush1.msra.mxu0 0.0
    %89 = vmatprep.subr.mxu0 0.0
    %90 = vmatpush1.msra.mxu0 0.0
    %91 = vmatprep.subr.mxu0 0.0
    %92 = vmatpush1.msra.mxu0 0.0
    %93 = vmatprep.subr.mxu0 0.0
    %94 = vmatpush1.msra.mxu0 0.0
    %95 = vmatprep.subr.mxu0 0.0
    %96 = vmatpush1.msra.mxu0 0.0
    %97 = vmatprep.subr.mxu0 0.0
    %98 = vmatpush1.msra.mxu0 0.0
    %99 = vmatprep.subr.mxu0 0.0
    %100 = vmatpush1.msra.mxu0 0.0
    %101 = vmatprep.subr.mxu0 0.0
    %102 = vmatpush1.msra.mxu0 0.0
    %103 = vmatprep.subr.mxu0 0.0
    %104 = vmatpush1.msra.mxu0 0.0
    %105 = vmatprep.subr.mxu0 0.0
    %106 = vmatpush1.msra.mxu0 0.0
    %107 = vmatprep.subr.mxu0 0.0
    %108 = vmatpush1.msra.mxu0 0.0
    %109 = vmatprep.subr.mxu0 0.0
    %110 = vmatpush1.msra.mxu0 0.0
    %111 = vmatprep.subr.mxu0 0.0
    %112 = vmatpush1.msra.mxu0 0.0
    %113 = vmatprep.mubr.f32.mxu0 0.0
    %114 = vmatmul.mubr.f32.gmra.mrb[0].mxu0 %v43
    %v115 = vpop.f32.mrb[0].mxu0
    %v116 = vadd.f32 %v39, %v115
    %v117 = vpop.f32.mrb[0].mxu0
    %118 = vdwg.mxu0
    %v119 = vmax.f32 %v116, 0.0
    %v120 = vld [vmem:[%s3] sm:$0xff]
    %v121 = vld [vmem:[%s4] sm:$0xff]
    %123 = vset.pattern.permute.xlu0 0
    %124 = vperm.xlu0 %123, %v121
    %v125 = vpop.permute.xlu0 %124
    %vm127 = vcmask 64512
    %v129 = vsel %vm127, %v120, 0
    %131 = vmatprep.subr.mxu0 0.0
    %132 = vmatpush1.msra.mxu0 %v119
    %133 = vmatprep.subr.mxu0 0.0
    %134 = vmatpush1.msra.mxu0 0.0
    %135 = vmatprep.subr.mxu0 0.0
    %136 = vmatpush1.msra.mxu0 0.0
    %137 = vmatprep.subr.mxu0 0.0
    %138 = vmatpush1.msra.mxu0 0.0
    %139 = vmatprep.subr.mxu0 0.0
    %140 = vmatpush1.msra.mxu0 0.0
    %141 = vmatprep.subr.mxu0 0.0
    %142 = vmatpush1.msra.mxu0 0.0
    %143 = vmatprep.subr.mxu0 0.0
    %144 = vmatpush1.msra.mxu0 0.0
    %145 = vmatprep.subr.mxu0 0.0
    %146 = vmatpush1.msra.mxu0 0.0
    %147 = vmatprep.subr.mxu0 0.0
    %148 = vmatpush1.msra.mxu0 0.0
    %149 = vmatprep.subr.mxu0 0.0
    %150 = vmatpush1.msra.mxu0 0.0
    %151 = vmatprep.subr.mxu0 0.0
    %152 = vmatpush1.msra.mxu0 0.0
    %153 = vmatprep.subr.mxu0 0.0
    %154 = vmatpush1.msra.mxu0 0.0
    %155 = vmatprep.subr.mxu0 0.0
    %156 = vmatpush1.msra.mxu0 0.0
    %157 = vmatprep.subr.mxu0 0.0
    %158 = vmatpush1.msra.mxu0 0.0
    %159 = vmatprep.subr.mxu0 0.0
    %160 = vmatpush1.msra.mxu0 0.0
    %161 = vmatprep.subr.mxu0 0.0
    %162 = vmatpush1.msra.mxu0 0.0
    %163 = vmatprep.subr.mxu0 0.0
    %164 = vmatpush1.msra.mxu0 0.0
    %165 = vmatprep.subr.mxu0 0.0
    %166 = vmatpush1.msra.mxu0 0.0
    %167 = vmatprep.subr.mxu0 0.0
    %168 = vmatpush1.msra.mxu0 0.0
    %169 = vmatprep.subr.mxu0 0.0
    %170 = vmatpush1.msra.mxu0 0.0
    %171 = vmatprep.subr.mxu0 0.0
    %172 = vmatpush1.msra.mxu0 0.0
    %173 = vmatprep.subr.mxu0 0.0
    %174 = vmatpush1.msra.mxu0 0.0
    %175 = vmatprep.subr.mxu0 0.0
    %176 = vmatpush1.msra.mxu0 0.0
    %177 = vmatprep.subr.mxu0 0.0
    %178 = vmatpush1.msra.mxu0 0.0
    %179 = vmatprep.subr.mxu0 0.0
    %180 = vmatpush1.msra.mxu0 0.0
    %181 = vmatprep.subr.mxu0 0.0
    %182 = vmatpush1.msra.mxu0 0.0
    %183 = vmatprep.subr.mxu0 0.0
    %184 = vmatpush1.msra.mxu0 0.0
    %185 = vmatprep.subr.mxu0 0.0
    %186 = vmatpush1.msra.mxu0 0.0
    %187 = vmatprep.subr.mxu0 0.0
    %188 = vmatpush1.msra.mxu0 0.0
    %189 = vmatprep.subr.mxu0 0.0
    %190 = vmatpush1.msra.mxu0 0.0
    %191 = vmatprep.subr.mxu0 0.0
    %192 = vmatpush1.msra.mxu0 0.0
    %193 = vmatprep.subr.mxu0 0.0
    %194 = vmatpush1.msra.mxu0 0.0
    %195 = vmatprep.mubr.f32.mxu0 0.0
    %196 = vmatmul.mubr.f32.gmra.mrb[0].mxu0 %v129
    %v197 = vpop.f32.mrb[0].mxu0
    %v198 = vadd.f32 %v125, %v197
    %v199 = vpop.f32.mrb[0].mxu0
    %200 = vdwg.mxu0
    %v201 = vmax.f32 %v198, 0.0
    %v202 = vld [vmem:[%s5] sm:$0xff]
    %v203 = vld [vmem:[%s6] sm:$0xff]
    %205 = vset.pattern.permute.xlu0 0
    %206 = vperm.xlu0 %205, %v203
    %v207 = vpop.permute.xlu0 %206
    %v210 = vsel %vm127, %v202, 0
    %212 = vmatprep.subr.mxu0 0.0
    %213 = vmatpush1.msra.mxu0 %v201
    %214 = vmatprep.subr.mxu0 0.0
    %215 = vmatpush1.msra.mxu0 0.0
    %216 = vmatprep.subr.mxu0 0.0
    %217 = vmatpush1.msra.mxu0 0.0
    %218 = vmatprep.subr.mxu0 0.0
    %219 = vmatpush1.msra.mxu0 0.0
    %220 = vmatprep.subr.mxu0 0.0
    %221 = vmatpush1.msra.mxu0 0.0
    %222 = vmatprep.subr.mxu0 0.0
    %223 = vmatpush1.msra.mxu0 0.0
    %224 = vmatprep.subr.mxu0 0.0
    %225 = vmatpush1.msra.mxu0 0.0
    %226 = vmatprep.subr.mxu0 0.0
    %227 = vmatpush1.msra.mxu0 0.0
    %228 = vmatprep.subr.mxu0 0.0
    %229 = vmatpush1.msra.mxu0 0.0
    %230 = vmatprep.subr.mxu0 0.0
    %231 = vmatpush1.msra.mxu0 0.0
    %232 = vmatprep.subr.mxu0 0.0
    %233 = vmatpush1.msra.mxu0 0.0
    %234 = vmatprep.subr.mxu0 0.0
    %235 = vmatpush1.msra.mxu0 0.0
    %236 = vmatprep.subr.mxu0 0.0
    %237 = vmatpush1.msra.mxu0 0.0
    %238 = vmatprep.subr.mxu0 0.0
    %239 = vmatpush1.msra.mxu0 0.0
    %240 = vmatprep.subr.mxu0 0.0
    %241 = vmatpush1.msra.mxu0 0.0
    %242 = vmatprep.subr.mxu0 0.0
    %243 = vmatpush1.msra.mxu0 0.0
    %244 = vmatprep.subr.mxu0 0.0
    %245 = vmatpush1.msra.mxu0 0.0
    %246 = vmatprep.subr.mxu0 0.0
    %247 = vmatpush1.msra.mxu0 0.0
    %248 = vmatprep.subr.mxu0 0.0
    %249 = vmatpush1.msra.mxu0 0.0
    %250 = vmatprep.subr.mxu0 0.0
    %251 = vmatpush1.msra.mxu0 0.0
    %252 = vmatprep.subr.mxu0 0.0
    %253 = vmatpush1.msra.mxu0 0.0
    %254 = vmatprep.subr.mxu0 0.0
    %255 = vmatpush1.msra.mxu0 0.0
    %256 = vmatprep.subr.mxu0 0.0
    %257 = vmatpush1.msra.mxu0 0.0
    %258 = vmatprep.subr.mxu0 0.0
    %259 = vmatpush1.msra.mxu0 0.0
    %260 = vmatprep.subr.mxu0 0.0
    %261 = vmatpush1.msra.mxu0 0.0
    %262 = vmatprep.subr.mxu0 0.0
    %263 = vmatpush1.msra.mxu0 0.0
    %264 = vmatprep.subr.mxu0 0.0
    %265 = vmatpush1.msra.mxu0 0.0
    %266 = vmatprep.subr.mxu0 0.0
    %267 = vmatpush1.msra.mxu0 0.0
    %268 = vmatprep.subr.mxu0 0.0
    %269 = vmatpush1.msra.mxu0 0.0
    %270 = vmatprep.subr.mxu0 0.0
    %271 = vmatpush1.msra.mxu0 0.0
    %272 = vmatprep.subr.mxu0 0.0
    %273 = vmatpush1.msra.mxu0 0.0
    %274 = vmatprep.subr.mxu0 0.0
    %275 = vmatpush1.msra.mxu0 0.0
    %276 = vmatprep.mubr.f32.mxu0 0.0
    %277 = vmatmul.mubr.f32.gmra.mrb[0].mxu0 %v210
    %v278 = vpop.f32.mrb[0].mxu0
    %v279 = vadd.f32 %v207, %v278
    %v280 = vpop.f32.mrb[0].mxu0
    %281 = vdwg.mxu0
    %v282 = vmax.f32 %v279, 0.0
    %v283 = vld [vmem:[%s7] sm:$0x7]
    %v284 = vld [vmem:[%s8] sm:$0x7]
    %286 = vset.pattern.permute.xlu0 0
    %287 = vperm.xlu0 %286, %v284
    %v288 = vpop.permute.xlu0 %287
    %v291 = vsel %vm127, %v283, 0
    %293 = vmatprep.subr.mxu0 0.0
    %294 = vmatpush1.msra.mxu0 %v282
    %295 = vmatprep.subr.mxu0 0.0
    %296 = vmatpush1.msra.mxu0 0.0
    %297 = vmatprep.subr.mxu0 0.0
    %298 = vmatpush1.msra.mxu0 0.0
    %299 = vmatprep.subr.mxu0 0.0
    %300 = vmatpush1.msra.mxu0 0.0
    %301 = vmatprep.subr.mxu0 0.0
    %302 = vmatpush1.msra.mxu0 0.0
    %303 = vmatprep.subr.mxu0 0.0
    %304 = vmatpush1.msra.mxu0 0.0
    %305 = vmatprep.subr.mxu0 0.0
    %306 = vmatpush1.msra.mxu0 0.0
    %307 = vmatprep.subr.mxu0 0.0
    %308 = vmatpush1.msra.mxu0 0.0
    %309 = vmatprep.subr.mxu0 0.0
    %310 = vmatpush1.msra.mxu0 0.0
    %311 = vmatprep.subr.mxu0 0.0
    %312 = vmatpush1.msra.mxu0 0.0
    %313 = vmatprep.subr.mxu0 0.0
    %314 = vmatpush1.msra.mxu0 0.0
    %315 = vmatprep.subr.mxu0 0.0
    %316 = vmatpush1.msra.mxu0 0.0
    %317 = vmatprep.subr.mxu0 0.0
    %318 = vmatpush1.msra.mxu0 0.0
    %319 = vmatprep.subr.mxu0 0.0
    %320 = vmatpush1.msra.mxu0 0.0
    %321 = vmatprep.subr.mxu0 0.0
    %322 = vmatpush1.msra.mxu0 0.0
    %323 = vmatprep.subr.mxu0 0.0
    %324 = vmatpush1.msra.mxu0 0.0
    %325 = vmatprep.subr.mxu0 0.0
    %326 = vmatpush1.msra.mxu0 0.0
    %327 = vmatprep.subr.mxu0 0.0
    %328 = vmatpush1.msra.mxu0 0.0
    %329 = vmatprep.subr.mxu0 0.0
    %330 = vmatpush1.msra.mxu0 0.0
    %331 = vmatprep.subr.mxu0 0.0
    %332 = vmatpush1.msra.mxu0 0.0
    %333 = vmatprep.subr.mxu0 0.0
    %334 = vmatpush1.msra.mxu0 0.0
    %335 = vmatprep.subr.mxu0 0.0
    %336 = vmatpush1.msra.mxu0 0.0
    %337 = vmatprep.subr.mxu0 0.0
    %338 = vmatpush1.msra.mxu0 0.0
    %339 = vmatprep.subr.mxu0 0.0
    %340 = vmatpush1.msra.mxu0 0.0
    %341 = vmatprep.subr.mxu0 0.0
    %342 = vmatpush1.msra.mxu0 0.0
    %343 = vmatprep.subr.mxu0 0.0
    %344 = vmatpush1.msra.mxu0 0.0
    %345 = vmatprep.subr.mxu0 0.0
    %346 = vmatpush1.msra.mxu0 0.0
    %347 = vmatprep.subr.mxu0 0.0
    %348 = vmatpush1.msra.mxu0 0.0
    %349 = vmatprep.subr.mxu0 0.0
    %350 = vmatpush1.msra.mxu0 0.0
    %351 = vmatprep.subr.mxu0 0.0
    %352 = vmatpush1.msra.mxu0 0.0
    %353 = vmatprep.subr.mxu0 0.0
    %354 = vmatpush1.msra.mxu0 0.0
    %355 = vmatprep.subr.mxu0 0.0
    %356 = vmatpush1.msra.mxu0 0.0
    %357 = vmatprep.mubr.f32.mxu0 0.0
    %358 = vmatmul.mubr.f32.gmra.mrb[0].mxu0 %v291
    %v359 = vpop.f32.mrb[0].mxu0
    %v360 = vadd.f32 %v288, %v359
    %v361 = vpop.f32.mrb[0].mxu0
    %362 = vdwg.mxu0
    %363 = vst [vmem:[#allocation2] sm:$0x7] %v360
    // Predicated region
    $region38: #{tpu_custom_call.1} parent=1 // pred_check
      _
    $region39: #{tpu_custom_call.1} parent=1 // pred_check_branch
      %365 = sbr.rel (0) target = $region41
    $region40: #{tpu_custom_call.1} parent=1 // pred_region
      %s367 = ssub.s32 64, 64
      %368 = vsyncadd [#allocation3], %s367
      %s370 = sshll.u32 [#allocation2], 4
      %s371 = int_to_ptr.vmem [resolvable:$true] %s370
      %373 = dma.vmem_to_hbm [thread:$0]  %s371, 64, %s9, [#allocation3]
    $region41: #{tpu_custom_call.1} parent=1 // pred_fallthru
      _
    // Predicated region
    $region42: #{tpu_custom_call.1} parent=1 // pred_check
      _
    $region43: #{tpu_custom_call.1} parent=1 // pred_check_branch
      %375 = sbr.rel (0) target = $region45
    $region44: #{tpu_custom_call.1} parent=1 // pred_region
      %376 = dma.done [#allocation3], 64
    $region45: #{tpu_custom_call.1} parent=1 // pred_fallthru
      _
    %377 = vsyncpa [#allocation3], 1

</llo_original>
